<compile_context>
chip_gen: v6e
topology: v6e:2x2x1
jax: 0.10.0
libtpu: 0.0.40
codegen_flags: <defaults>
</compile_context>

<pallas_src>
import functools

import jax
import jax.numpy as jnp
from jax import lax
from jax.experimental import pallas as pl
from jax.experimental.pallas import tpu as pltpu


def _round_up(x, m):
    return (x + m - 1) // m * m


def _deconv_relu_kernel(wm_ref, a_ref, b_ref, o_ref):
    # wm_ref: (PH_pad, CR_pad)     f32 VMEM  phase-weight matrix (one vreg, resident)
    # a_ref:  (CR_pad, LANE_TILE)  f32 VMEM  pre-shifted input slabs (this lane tile)
    # b_ref:  (1,)                 f32 SMEM  bias
    # o_ref:  (PH_pad, LANE_TILE)  f32 VMEM  per-phase outputs
    acc = jnp.dot(wm_ref[...], a_ref[...], preferred_element_type=jnp.float32)
    o_ref[...] = jnp.maximum(acc + b_ref[0], 0.0).astype(o_ref.dtype)


@functools.partial(jax.jit, static_argnames=("stride",))
def decoder_ae_forward(x, weight, bias, *, stride):
    """relu(conv_transpose2d(x, weight, bias, stride=stride)); NCHW in/out.

    x:      (N, C, H, W)  float
    weight: (C, 1, K, K)  float   (PyTorch ConvTranspose2d weight layout)
    bias:   (1,)          float
    """
    orig_dtype = x.dtype
    x = x.astype(jnp.float32)
    N, C, H, W = x.shape
    Cw, Co, K, Kw = weight.shape
    assert Cw == C and Co == 1 and Kw == K
    s = int(stride)
    OH = (H - 1) * s + K
    OW = (W - 1) * s + K

    Mmax = -(-K // s)                 # ceil(K/s): taps per phase per spatial axis
    P = Mmax - 1                      # padding that absorbs every (m, n) shift
    QH, QW = H + P, W + P             # per-phase output extent (>= ceil(OH/s), ceil(OW/s))
    Hpad, Wpad = H + 2 * P, W + 2 * P
    LFLAT = Hpad * Wpad               # flat spatial length per (batch, channel)
    PH = s * s                        # number of output stride-phases
    PH_pad = max(_round_up(PH, 8), 8)  # full-sublane output tile
    CR = C * Mmax * Mmax              # contraction length (channels x shifts)
    CR_pad = 128                      # pad contraction dim to one clean MXU tile
    assert CR <= CR_pad  # TODO(synk): tile the contraction dim if C*ceil(K/s)^2 > 128

    # Lane-dense layout: batch folded into the lane axis; lane-tile grid for big sizes.
    lanes = _round_up(N * LFLAT, 128)
    LANE_TILE = lanes if lanes <= 8192 else 8192
    ACCW = _round_up(lanes, LANE_TILE)
    grid = (ACCW // LANE_TILE,)

    # ---- host glue (tiny tensors; fused with the pallas_call under jit) ----
    xp = jnp.pad(x, ((0, 0), (0, 0), (P, P), (P, P)))               # (N, C, Hpad, Wpad)
    xw = jnp.transpose(xp, (1, 0, 2, 3)).reshape(C, N * LFLAT)      # batch along lanes
    XLEN = ACCW + P * Wpad + P                                      # covers the max shift
    xw = jnp.pad(xw, ((0, 0), (0, XLEN - N * LFLAT)))               # (C, XLEN)

    # Pre-shifted slab matrix A: row (c, m, n) starts at static offset
    # (P-m)*Wpad + (P-n), so every kernel load is lane-aligned.  Reads that
    # bleed past a batch block / into the zero tail only land in lanes that
    # the decode below slices off.
    slabs = []
    for m in range(Mmax):
        for n in range(Mmax):
            off = (P - m) * Wpad + (P - n)
            slabs.append(xw[:, off:off + ACCW])                     # (C, ACCW)
    A = jnp.stack(slabs, axis=1).reshape(CR, ACCW)                  # row = (c*Mmax + m)*Mmax + n
    A = jnp.pad(A, ((0, CR_pad - CR), (0, 0)))                      # (CR_pad, ACCW)

    # Phase-weight matrix Wm[p, (c,m,n)] = w[c, rh + s*m, rw + s*n] (0 if tap >= K).
    w = weight[:, 0, :, :].astype(jnp.float32)                      # (C, K, K)
    zero = jnp.zeros((), jnp.float32)
    rows = []
    for rh in range(s):
        for rw in range(s):
            cols = []
            for c in range(C):
                for m in range(Mmax):
                    for n in range(Mmax):
                        kh, kw = rh + s * m, rw + s * n
                        cols.append(w[c, kh, kw] if (kh < K and kw < K) else zero)
            rows.append(jnp.stack(cols))
    Wm = jnp.stack(rows)                                            # (PH, CR)
    Wm = jnp.pad(Wm, ((0, PH_pad - PH), (0, CR_pad - CR)))          # (PH_pad, CR_pad)

    bflat = bias.astype(jnp.float32).reshape(1)                     # (1,) -> SMEM

    out_flat = pl.pallas_call(
        _deconv_relu_kernel,
        out_shape=jax.ShapeDtypeStruct((PH_pad, ACCW), jnp.float32),
        grid=grid,
        in_specs=[
            pl.BlockSpec((PH_pad, CR_pad), lambda i: (0, 0)),        # Wm (stays resident)
            pl.BlockSpec((CR_pad, LANE_TILE), lambda i: (0, i)),     # A lane tile
            pl.BlockSpec(memory_space=pltpu.MemorySpace.SMEM),       # bias scalar
        ],
        out_specs=pl.BlockSpec((PH_pad, LANE_TILE), lambda i: (0, i)),
        compiler_params=pltpu.CompilerParams(
            dimension_semantics=("parallel",)),
    )(Wm, A, bflat)

    # Decode phases: (PH_pad, ACCW) -> (N, 1, OH, OW) (cheap reshape/transpose, fused).
    y = out_flat[:PH, :N * LFLAT].reshape(s, s, N, Hpad, Wpad)[:, :, :, :QH, :QW]
    y = jnp.transpose(y, (2, 3, 0, 4, 1)).reshape(N, s * QH, s * QW)
    y = y[:, :OH, :OW].reshape(N, 1, OH, OW)
    return y.astype(orig_dtype)


if __name__ == "__main__":
    # Small shapes consistent with the module: decoderAE(c2=4, k=3, strd=2)
    c2, k, strd = 4, 3, 2
    N, H, W = 2, 16, 16

    key = jax.random.PRNGKey(0)
    kx, kw_, kb = jax.random.split(key, 3)
    x = jax.random.normal(kx, (N, c2, H, W), jnp.float32)

    # Deterministic PyTorch-like uniform init for ConvTranspose2d(c2, 1, k, k)
    bound = 1.0 / ((c2 * k * k) ** 0.5)
    weight = jax.random.uniform(kw_, (c2, 1, k, k), jnp.float32, -bound, bound)
    bias = jax.random.uniform(kb, (1,), jnp.float32, -bound, bound)

    out = decoder_ae_forward(x, weight, bias, stride=strd)
    out = jax.block_until_ready(out)

    # Reference: same math via lax transposed convolution (lhs_dilation) + ReLU.
    ref = lax.conv_general_dilated(
        x,
        jnp.transpose(weight, (1, 0, 2, 3))[:, :, ::-1, ::-1],
        window_strides=(1, 1),
        padding=[(k - 1, k - 1), (k - 1, k - 1)],
        lhs_dilation=(strd, strd),
        dimension_numbers=("NCHW", "OIHW", "NCHW"),
    ) + bias.reshape(1, 1, 1, 1)
    ref = jnp.maximum(ref, 0.0)

    assert out.shape == (N, 1, (H - 1) * strd + k, (W - 1) * strd + k)
    assert jnp.allclose(out, ref, atol=1e-5, rtol=1e-5)
    print("KERNEL_OK")
</pallas_src>

<mosaic_0001>
module attributes {stable_mosaic.version = 11 : i64} {
  func.func @_deconv_relu_kernel(%arg0: i32, %arg1: memref<8x128xf32, #tpu.memory_space<vmem>>, %arg2: memref<128x768xf32, #tpu.memory_space<vmem>>, %arg3: memref<1xf32, #tpu.memory_space<smem>>, %arg4: memref<8x768xf32, #tpu.memory_space<vmem>>) attributes {dimension_semantics = [#tpu.dimension_semantics<parallel>], iteration_bounds = array<i64: 1>, scalar_prefetch = 0 : i64, scratch_operands = 0 : i64, tpu.core_type = #tpu.core_type<tc>, window_params = [{pipeline_mode = #tpu.pipeline_mode<synchronous>, transform_indices = @transform_0, window_bounds = array<i64: 8, 128>}, {transform_indices = @transform_1, window_bounds = array<i64: 128, 768>}, {transform_indices = @transform_2, window_bounds = array<i64: 1>}, {transform_indices = @transform_3, window_bounds = array<i64: 8, 768>}]} {
    %c0 = arith.constant 0 : index
    %c0_0 = arith.constant 0 : index
    %0 = vector.load %arg1[%c0, %c0_0] : memref<8x128xf32, #tpu.memory_space<vmem>>, vector<8x128xf32>
    %c0_1 = arith.constant 0 : index
    %c0_2 = arith.constant 0 : index
    %1 = vector.load %arg2[%c0_1, %c0_2] : memref<128x768xf32, #tpu.memory_space<vmem>>, vector<128x768xf32>
    %cst = arith.constant dense<0.000000e+00> : vector<8x768xf32>
    %2 = tpu.matmul %0, %1, %cst {dimension_numbers = #tpu.dot_dimension_numbers<[1], [0], [0], [1], [0, 0, 1, 1], [], []>} : vector<8x128xf32>, vector<128x768xf32>, vector<8x768xf32> -> vector<8x768xf32>
    %c0_3 = arith.constant 0 : index
    %3 = memref.load %arg3[%c0_3] : memref<1xf32, #tpu.memory_space<smem>>
    %4 = vector.broadcast %3 : f32 to vector<8x768xf32>
    %5 = arith.addf %2, %4 : vector<8x768xf32>
    %cst_4 = arith.constant 0.000000e+00 : f32
    %6 = vector.broadcast %cst_4 : f32 to vector<8x768xf32>
    %7 = arith.maximumf %5, %6 : vector<8x768xf32>
    %c0_5 = arith.constant 0 : index
    %c0_6 = arith.constant 0 : index
    %8 = vector.load %arg4[%c0_5, %c0_6] : memref<8x768xf32, #tpu.memory_space<vmem>>, vector<8x768xf32>
    tpu.vector_store %arg4[%c0_5, %c0_6], %7 {strides = array<i32>} : memref<8x768xf32, #tpu.memory_space<vmem>>, vector<8x768xf32>,
    return
  }
  func.func @transform_0(%arg0: i32) -> (i32, i32) {
    %c0_i32 = arith.constant 0 : i32
    %c0_i32_0 = arith.constant 0 : i32
    %c0_i32_1 = arith.constant 0 : i32
    return %c0_i32, %c0_i32_0 : i32, i32
  }
  func.func @transform_1(%arg0: i32) -> (i32, i32) {
    %c0_i32 = arith.constant 0 : i32
    %c0_i32_0 = arith.constant 0 : i32
    return %c0_i32, %arg0 : i32, i32
  }
  func.func @transform_2(%arg0: i32) -> i32 {
    %c0_i32 = arith.constant 0 : i32
    %c0_i32_0 = arith.constant 0 : i32
    return %c0_i32 : i32
  }
  func.func @transform_3(%arg0: i32) -> (i32, i32) {
    %c0_i32 = arith.constant 0 : i32
    %c0_i32_0 = arith.constant 0 : i32
    return %c0_i32, %arg0 : i32, i32
  }
}

</mosaic_0001>

<llo_original>
// kernel: decoder_ae_forward.1
$region0: #{decoder_ae_forward.1}
  #allocation0 [shape = 'u32[]', space=smem, size = 0x4, offset = 0x4, fixed_abs, tag = 'smem constant byte address 0x4 - core index']
  #allocation1 [shape = 'u32[144,128]{1,0:T(1,128)}', space=vmem, size = 0x12000, scoped, tag = 'internal scratch']
  #allocation2 [shape = 'f32[1]{0:T(128)S(6)}', space=smem, size = 0x200, scoped, tag = 'scoped memory for decoder_ae_forward.1']
  %s0 = inlined_call_operand.vmem [shape: f32[8,128], index: 0, kind: input, shape index: {}]
  %s1 = inlined_call_operand.vmem [shape: f32[128,768], index: 1, kind: input, shape index: {}]
  %s2 = inlined_call_operand.<no memory space> [shape: f32[1], index: 2, kind: input, shape index: {}]
  %s3 = inlined_call_operand.vmem [shape: f32[8,768], index: 3, kind: output, shape index: {}]
  %s4 = sld [smem:[#allocation0]]
  $region22: #{decoder_ae_forward.1} parent=0
    _
  %s6 = ssub.s32 1, %s4
  %s7 = scalar_select 0, %s6, %s4
  %8 = sst [smem:[#allocation2]] %s2
  // Predicated region
  $region2: #{decoder_ae_forward.1} parent=0 // pred_check
    _
  $region3: #{decoder_ae_forward.1} parent=0 // pred_check_branch
    %10 = sbr.rel (0) target = $region5
  $region4: #{decoder_ae_forward.1} parent=0 // pred_region
    _
  $region5: #{decoder_ae_forward.1} parent=0 // pred_fallthru
    _
  // Predicated region
  $region6: #{decoder_ae_forward.1} parent=0 // pred_check
    _
  $region7: #{decoder_ae_forward.1} parent=0 // pred_check_branch
    %12 = sbr.rel (0) target = $region9
  $region8: #{decoder_ae_forward.1} parent=0 // pred_region
    _
  $region9: #{decoder_ae_forward.1} parent=0 // pred_fallthru
    _
  // Predicated region
  $region10: #{decoder_ae_forward.1} parent=0 // pred_check
    _
  $region11: #{decoder_ae_forward.1} parent=0 // pred_check_branch
    %14 = sbr.rel (0) target = $region13
  $region12: #{decoder_ae_forward.1} parent=0 // pred_region
    _
  $region13: #{decoder_ae_forward.1} parent=0 // pred_fallthru
    _
  %v15 = vld [vmem:[%s0] sm:$0xff]
  %v16 = vld [vmem:[%s1] sm:$0xff]
  %v17 = vld [vmem:[%s1 + $0x8] sm:$0xff]
  %v18 = vld [vmem:[%s1 + $0x10] sm:$0xff]
  %v19 = vld [vmem:[%s1 + $0x18] sm:$0xff]
  %v20 = vld [vmem:[%s1 + $0x20] sm:$0xff]
  %v21 = vld [vmem:[%s1 + $0x28] sm:$0xff]
  %v22 = vld [vmem:[%s1 + $0x30] sm:$0xff]
  %v23 = vld [vmem:[%s1 + $0x38] sm:$0xff]
  %v24 = vld [vmem:[%s1 + $0x40] sm:$0xff]
  %v25 = vld [vmem:[%s1 + $0x48] sm:$0xff]
  %v26 = vld [vmem:[%s1 + $0x50] sm:$0xff]
  %v27 = vld [vmem:[%s1 + $0x58] sm:$0xff]
  %v28 = vld [vmem:[%s1 + $0x60] sm:$0xff]
  %v29 = vld [vmem:[%s1 + $0x68] sm:$0xff]
  %v30 = vld [vmem:[%s1 + $0x70] sm:$0xff]
  %v31 = vld [vmem:[%s1 + $0x78] sm:$0xff]
  %v32 = vld [vmem:[%s1 + $0x80] sm:$0xff]
  %v33 = vld [vmem:[%s1 + $0x88] sm:$0xff]
  %v34 = vld [vmem:[%s1 + $0x90] sm:$0xff]
  %v35 = vld [vmem:[%s1 + $0x98] sm:$0xff]
  %v36 = vld [vmem:[%s1 + $0xa0] sm:$0xff]
  %v37 = vld [vmem:[%s1 + $0xa8] sm:$0xff]
  %v38 = vld [vmem:[%s1 + $0xb0] sm:$0xff]
  %v39 = vld [vmem:[%s1 + $0xb8] sm:$0xff]
  %v40 = vld [vmem:[%s1 + $0xc0] sm:$0xff]
  %v41 = vld [vmem:[%s1 + $0xc8] sm:$0xff]
  %v42 = vld [vmem:[%s1 + $0xd0] sm:$0xff]
  %v43 = vld [vmem:[%s1 + $0xd8] sm:$0xff]
  %v44 = vld [vmem:[%s1 + $0xe0] sm:$0xff]
  %v45 = vld [vmem:[%s1 + $0xe8] sm:$0xff]
  %v46 = vld [vmem:[%s1 + $0xf0] sm:$0xff]
  %v47 = vld [vmem:[%s1 + $0xf8] sm:$0xff]
  %v48 = vld [vmem:[%s1 + $0x100] sm:$0xff]
  %v49 = vld [vmem:[%s1 + $0x108] sm:$0xff]
  %v50 = vld [vmem:[%s1 + $0x110] sm:$0xff]
  %v51 = vld [vmem:[%s1 + $0x118] sm:$0xff]
  %v52 = vld [vmem:[%s1 + $0x120] sm:$0xff]
  %v53 = vld [vmem:[%s1 + $0x128] sm:$0xff]
  %v54 = vld [vmem:[%s1 + $0x130] sm:$0xff]
  %v55 = vld [vmem:[%s1 + $0x138] sm:$0xff]
  %v56 = vld [vmem:[%s1 + $0x140] sm:$0xff]
  %v57 = vld [vmem:[%s1 + $0x148] sm:$0xff]
  %v58 = vld [vmem:[%s1 + $0x150] sm:$0xff]
  %v59 = vld [vmem:[%s1 + $0x158] sm:$0xff]
  %v60 = vld [vmem:[%s1 + $0x160] sm:$0xff]
  %v61 = vld [vmem:[%s1 + $0x168] sm:$0xff]
  %v62 = vld [vmem:[%s1 + $0x170] sm:$0xff]
  %v63 = vld [vmem:[%s1 + $0x178] sm:$0xff]
  %v64 = vld [vmem:[%s1 + $0x180] sm:$0xff]
  %v65 = vld [vmem:[%s1 + $0x188] sm:$0xff]
  %v66 = vld [vmem:[%s1 + $0x190] sm:$0xff]
  %v67 = vld [vmem:[%s1 + $0x198] sm:$0xff]
  %v68 = vld [vmem:[%s1 + $0x1a0] sm:$0xff]
  %v69 = vld [vmem:[%s1 + $0x1a8] sm:$0xff]
  %v70 = vld [vmem:[%s1 + $0x1b0] sm:$0xff]
  %v71 = vld [vmem:[%s1 + $0x1b8] sm:$0xff]
  %v72 = vld [vmem:[%s1 + $0x1c0] sm:$0xff]
  %v73 = vld [vmem:[%s1 + $0x1c8] sm:$0xff]
  %v74 = vld [vmem:[%s1 + $0x1d0] sm:$0xff]
  %v75 = vld [vmem:[%s1 + $0x1d8] sm:$0xff]
  %v76 = vld [vmem:[%s1 + $0x1e0] sm:$0xff]
  %v77 = vld [vmem:[%s1 + $0x1e8] sm:$0xff]
  %v78 = vld [vmem:[%s1 + $0x1f0] sm:$0xff]
  %v79 = vld [vmem:[%s1 + $0x1f8] sm:$0xff]
  %v80 = vld [vmem:[%s1 + $0x200] sm:$0xff]
  %v81 = vld [vmem:[%s1 + $0x208] sm:$0xff]
  %v82 = vld [vmem:[%s1 + $0x210] sm:$0xff]
  %v83 = vld [vmem:[%s1 + $0x218] sm:$0xff]
  %v84 = vld [vmem:[%s1 + $0x220] sm:$0xff]
  %v85 = vld [vmem:[%s1 + $0x228] sm:$0xff]
  %v86 = vld [vmem:[%s1 + $0x230] sm:$0xff]
  %v87 = vld [vmem:[%s1 + $0x238] sm:$0xff]
  %v88 = vld [vmem:[%s1 + $0x240] sm:$0xff]
  %v89 = vld [vmem:[%s1 + $0x248] sm:$0xff]
  %v90 = vld [vmem:[%s1 + $0x250] sm:$0xff]
  %v91 = vld [vmem:[%s1 + $0x258] sm:$0xff]
  %v92 = vld [vmem:[%s1 + $0x260] sm:$0xff]
  %v93 = vld [vmem:[%s1 + $0x268] sm:$0xff]
  %v94 = vld [vmem:[%s1 + $0x270] sm:$0xff]
  %v95 = vld [vmem:[%s1 + $0x278] sm:$0xff]
  %v96 = vld [vmem:[%s1 + $0x280] sm:$0xff]
  %v97 = vld [vmem:[%s1 + $0x288] sm:$0xff]
  %v98 = vld [vmem:[%s1 + $0x290] sm:$0xff]
  %v99 = vld [vmem:[%s1 + $0x298] sm:$0xff]
  %v100 = vld [vmem:[%s1 + $0x2a0] sm:$0xff]
  %v101 = vld [vmem:[%s1 + $0x2a8] sm:$0xff]
  %v102 = vld [vmem:[%s1 + $0x2b0] sm:$0xff]
  %v103 = vld [vmem:[%s1 + $0x2b8] sm:$0xff]
  %v104 = vld [vmem:[%s1 + $0x2c0] sm:$0xff]
  %v105 = vld [vmem:[%s1 + $0x2c8] sm:$0xff]
  %v106 = vld [vmem:[%s1 + $0x2d0] sm:$0xff]
  %v107 = vld [vmem:[%s1 + $0x2d8] sm:$0xff]
  %v108 = vld [vmem:[%s1 + $0x2e0] sm:$0xff]
  %v109 = vld [vmem:[%s1 + $0x2e8] sm:$0xff]
  %v110 = vld [vmem:[%s1 + $0x2f0] sm:$0xff]
  %v111 = vld [vmem:[%s1 + $0x2f8] sm:$0xff]
  %s112 = sld [smem:[#allocation2]]
  %v113 = vstv %s112
  %114 = vmatprep.subr.mxu0 %v107
  %115 = vmatpush1.msra.mxu0 %v106
  %116 = vmatprep.subr.mxu0 %v101
  %117 = vmatpush1.msra.mxu0 %v100
  %118 = vmatprep.subr.mxu0 %v95
  %119 = vmatpush1.msra.mxu0 %v94
  %120 = vmatprep.subr.mxu0 %v89
  %121 = vmatpush1.msra.mxu0 %v88
  %122 = vmatprep.subr.mxu0 %v83
  %123 = vmatpush1.msra.mxu0 %v82
  %124 = vmatprep.subr.mxu0 %v77
  %125 = vmatpush1.msra.mxu0 %v76
  %126 = vmatprep.subr.mxu0 %v71
  %127 = vmatpush1.msra.mxu0 %v70
  %128 = vmatprep.subr.mxu0 %v65
  %129 = vmatpush1.msra.mxu0 %v64
  %130 = vmatprep.subr.mxu0 %v59
  %131 = vmatpush1.msra.mxu0 %v58
  %132 = vmatprep.subr.mxu0 %v53
  %133 = vmatpush1.msra.mxu0 %v52
  %134 = vmatprep.subr.mxu0 %v47
  %135 = vmatpush1.msra.mxu0 %v46
  %136 = vmatprep.subr.mxu0 %v41
  %137 = vmatpush1.msra.mxu0 %v40
  %138 = vmatprep.subr.mxu0 %v35
  %139 = vmatpush1.msra.mxu0 %v34
  %140 = vmatprep.subr.mxu0 %v29
  %141 = vmatpush1.msra.mxu0 %v28
  %142 = vmatprep.subr.mxu0 %v23
  %143 = vmatpush1.msra.mxu0 %v22
  %144 = vmatprep.subr.mxu0 %v17
  %145 = vmatpush1.msra.mxu0 %v16
  %146 = vmatprep.subr.mxu0 0.0
  %147 = vmatpush2.msra.mxu0 0.0
  %148 = vmatprep.subr.mxu0 0.0
  %149 = vmatpush2.msra.mxu0 0.0
  %150 = vmatprep.subr.mxu0 0.0
  %151 = vmatpush2.msra.mxu0 0.0
  %152 = vmatprep.subr.mxu0 0.0
  %153 = vmatpush2.msra.mxu0 0.0
  %154 = vmatprep.subr.mxu0 0.0
  %155 = vmatpush2.msra.mxu0 0.0
  %156 = vmatprep.subr.mxu0 0.0
  %157 = vmatpush2.msra.mxu0 0.0
  %158 = vmatprep.subr.mxu0 0.0
  %159 = vmatpush2.msra.mxu0 0.0
  %160 = vmatprep.subr.mxu0 0.0
  %161 = vmatpush2.msra.mxu0 0.0
  %162 = vmatprep.subr.mxu0 0.0
  %163 = vmatpush2.msra.mxu0 0.0
  %164 = vmatprep.subr.mxu0 0.0
  %165 = vmatpush2.msra.mxu0 0.0
  %166 = vmatprep.subr.mxu0 0.0
  %167 = vmatpush2.msra.mxu0 0.0
  %168 = vmatprep.subr.mxu0 0.0
  %169 = vmatpush2.msra.mxu0 0.0
  %170 = vmatprep.subr.mxu0 0.0
  %171 = vmatpush2.msra.mxu0 0.0
  %172 = vmatprep.subr.mxu0 0.0
  %173 = vmatpush2.msra.mxu0 0.0
  %174 = vmatprep.subr.mxu0 0.0
  %175 = vmatpush2.msra.mxu0 0.0
  %176 = vmatprep.subr.mxu0 0.0
  %177 = vmatpush2.msra.mxu0 0.0
  %178 = vmatprep.mubr.f32.mxu0 0.0
  %179 = vmatmul.mubr.f32.gmra.mxu0 %v15
  %v180 = vpop.f32.mrf.mxu0
  %v181 = vadd.f32 %v113, %v180
  %v182 = vpop.f32.mrf.mxu0
  %v183 = vadd.f32 %v113, %v182
  %184 = vdwg.mxu0
  %185 = vmatprep.subr.mxu0 %v109
  %186 = vmatpush1.msra.mxu0 %v108
  %187 = vmatprep.subr.mxu0 %v103
  %188 = vmatpush1.msra.mxu0 %v102
  %189 = vmatprep.subr.mxu0 %v97
  %190 = vmatpush1.msra.mxu0 %v96
  %191 = vmatprep.subr.mxu0 %v91
  %192 = vmatpush1.msra.mxu0 %v90
  %193 = vmatprep.subr.mxu0 %v85
  %194 = vmatpush1.msra.mxu0 %v84
  %195 = vmatprep.subr.mxu0 %v79
  %196 = vmatpush1.msra.mxu0 %v78
  %197 = vmatprep.subr.mxu0 %v73
  %198 = vmatpush1.msra.mxu0 %v72
  %199 = vmatprep.subr.mxu0 %v67
  %200 = vmatpush1.msra.mxu0 %v66
  %201 = vmatprep.subr.mxu0 %v61
  %202 = vmatpush1.msra.mxu0 %v60
  %203 = vmatprep.subr.mxu0 %v55
  %204 = vmatpush1.msra.mxu0 %v54
  %205 = vmatprep.subr.mxu0 %v49
  %206 = vmatpush1.msra.mxu0 %v48
  %207 = vmatprep.subr.mxu0 %v43
  %208 = vmatpush1.msra.mxu0 %v42
  %209 = vmatprep.subr.mxu0 %v37
  %210 = vmatpush1.msra.mxu0 %v36
  %211 = vmatprep.subr.mxu0 %v31
  %212 = vmatpush1.msra.mxu0 %v30
  %213 = vmatprep.subr.mxu0 %v25
  %214 = vmatpush1.msra.mxu0 %v24
  %215 = vmatprep.subr.mxu0 %v19
  %216 = vmatpush1.msra.mxu0 %v18
  %217 = vmatprep.subr.mxu0 0.0
  %218 = vmatpush2.msra.mxu0 0.0
  %219 = vmatprep.subr.mxu0 0.0
  %220 = vmatpush2.msra.mxu0 0.0
  %221 = vmatprep.subr.mxu0 0.0
  %222 = vmatpush2.msra.mxu0 0.0
  %223 = vmatprep.subr.mxu0 0.0
  %224 = vmatpush2.msra.mxu0 0.0
  %225 = vmatprep.subr.mxu0 0.0
  %226 = vmatpush2.msra.mxu0 0.0
  %227 = vmatprep.subr.mxu0 0.0
  %228 = vmatpush2.msra.mxu0 0.0
  %229 = vmatprep.subr.mxu0 0.0
  %230 = vmatpush2.msra.mxu0 0.0
  %231 = vmatprep.subr.mxu0 0.0
  %232 = vmatpush2.msra.mxu0 0.0
  %233 = vmatprep.subr.mxu0 0.0
  %234 = vmatpush2.msra.mxu0 0.0
  %235 = vmatprep.subr.mxu0 0.0
  %236 = vmatpush2.msra.mxu0 0.0
  %237 = vmatprep.subr.mxu0 0.0
  %238 = vmatpush2.msra.mxu0 0.0
  %239 = vmatprep.subr.mxu0 0.0
  %240 = vmatpush2.msra.mxu0 0.0
  %241 = vmatprep.subr.mxu0 0.0
  %242 = vmatpush2.msra.mxu0 0.0
  %243 = vmatprep.subr.mxu0 0.0
  %244 = vmatpush2.msra.mxu0 0.0
  %245 = vmatprep.subr.mxu0 0.0
  %246 = vmatpush2.msra.mxu0 0.0
  %247 = vmatprep.subr.mxu0 0.0
  %248 = vmatpush2.msra.mxu0 0.0
  %249 = vmatprep.mubr.f32.mxu0 0.0
  %250 = vmatmul.mubr.f32.gmra.mxu0 %v15
  %v251 = vpop.f32.mrf.mxu0
  %v252 = vadd.f32 %v113, %v251
  %v253 = vpop.f32.mrf.mxu0
  %v254 = vadd.f32 %v113, %v253
  %255 = vdwg.mxu0
  %256 = vmatprep.subr.mxu0 %v111
  %257 = vmatpush1.msra.mxu0 %v110
  %258 = vmatprep.subr.mxu0 %v105
  %259 = vmatpush1.msra.mxu0 %v104
  %260 = vmatprep.subr.mxu0 %v99
  %261 = vmatpush1.msra.mxu0 %v98
  %262 = vmatprep.subr.mxu0 %v93
  %263 = vmatpush1.msra.mxu0 %v92
  %264 = vmatprep.subr.mxu0 %v87
  %265 = vmatpush1.msra.mxu0 %v86
  %266 = vmatprep.subr.mxu0 %v81
  %267 = vmatpush1.msra.mxu0 %v80
  %268 = vmatprep.subr.mxu0 %v75
  %269 = vmatpush1.msra.mxu0 %v74
  %270 = vmatprep.subr.mxu0 %v69
  %271 = vmatpush1.msra.mxu0 %v68
  %272 = vmatprep.subr.mxu0 %v63
  %273 = vmatpush1.msra.mxu0 %v62
  %274 = vmatprep.subr.mxu0 %v57
  %275 = vmatpush1.msra.mxu0 %v56
  %276 = vmatprep.subr.mxu0 %v51
  %277 = vmatpush1.msra.mxu0 %v50
  %278 = vmatprep.subr.mxu0 %v45
  %279 = vmatpush1.msra.mxu0 %v44
  %280 = vmatprep.subr.mxu0 %v39
  %281 = vmatpush1.msra.mxu0 %v38
  %282 = vmatprep.subr.mxu0 %v33
  %283 = vmatpush1.msra.mxu0 %v32
  %284 = vmatprep.subr.mxu0 %v27
  %285 = vmatpush1.msra.mxu0 %v26
  %286 = vmatprep.subr.mxu0 %v21
  %287 = vmatpush1.msra.mxu0 %v20
  %288 = vmatprep.subr.mxu0 0.0
  %289 = vmatpush2.msra.mxu0 0.0
  %290 = vmatprep.subr.mxu0 0.0
  %291 = vmatpush2.msra.mxu0 0.0
  %292 = vmatprep.subr.mxu0 0.0
  %293 = vmatpush2.msra.mxu0 0.0
  %294 = vmatprep.subr.mxu0 0.0
  %295 = vmatpush2.msra.mxu0 0.0
  %296 = vmatprep.subr.mxu0 0.0
  %297 = vmatpush2.msra.mxu0 0.0
  %298 = vmatprep.subr.mxu0 0.0
  %299 = vmatpush2.msra.mxu0 0.0
  %300 = vmatprep.subr.mxu0 0.0
  %301 = vmatpush2.msra.mxu0 0.0
  %302 = vmatprep.subr.mxu0 0.0
  %303 = vmatpush2.msra.mxu0 0.0
  %304 = vmatprep.subr.mxu0 0.0
  %305 = vmatpush2.msra.mxu0 0.0
  %306 = vmatprep.subr.mxu0 0.0
  %307 = vmatpush2.msra.mxu0 0.0
  %308 = vmatprep.subr.mxu0 0.0
  %309 = vmatpush2.msra.mxu0 0.0
  %310 = vmatprep.subr.mxu0 0.0
  %311 = vmatpush2.msra.mxu0 0.0
  %312 = vmatprep.subr.mxu0 0.0
  %313 = vmatpush2.msra.mxu0 0.0
  %314 = vmatprep.subr.mxu0 0.0
  %315 = vmatpush2.msra.mxu0 0.0
  %316 = vmatprep.subr.mxu0 0.0
  %317 = vmatpush2.msra.mxu0 0.0
  %318 = vmatprep.subr.mxu0 0.0
  %319 = vmatpush2.msra.mxu0 0.0
  %320 = vmatprep.mubr.f32.mxu0 0.0
  %321 = vmatmul.mubr.f32.gmra.mxu0 %v15
  %v322 = vpop.f32.mrf.mxu0
  %v323 = vadd.f32 %v113, %v322
  %v324 = vpop.f32.mrf.mxu0
  %v325 = vadd.f32 %v113, %v324
  %326 = vdwg.mxu0
  %v327 = vmax.f32 %v181, 0.0
  %v328 = vmax.f32 %v183, 0.0
  %v329 = vmax.f32 %v252, 0.0
  %v330 = vmax.f32 %v254, 0.0
  %v331 = vmax.f32 %v323, 0.0
  %v332 = vmax.f32 %v325, 0.0
  %333 = vst [vmem:[%s3] sm:$0xff] %v327
  %334 = vst [vmem:[%s3 + $0x8] sm:$0xff] %v328
  %335 = vst [vmem:[%s3 + $0x10] sm:$0xff] %v329
  %336 = vst [vmem:[%s3 + $0x18] sm:$0xff] %v330
  %337 = vst [vmem:[%s3 + $0x20] sm:$0xff] %v331
  %338 = vst [vmem:[%s3 + $0x28] sm:$0xff] %v332
  // Predicated region
  $region14: #{decoder_ae_forward.1} parent=0 // pred_check
    _
  $region15: #{decoder_ae_forward.1} parent=0 // pred_check_branch
    %340 = sbr.rel (0) target = $region17
  $region16: #{decoder_ae_forward.1} parent=0 // pred_region
    _
  $region17: #{decoder_ae_forward.1} parent=0 // pred_fallthru
    _
  // Predicated region
  $region18: #{decoder_ae_forward.1} parent=0 // pred_check
    _
  $region19: #{decoder_ae_forward.1} parent=0 // pred_check_branch
    %342 = sbr.rel (0) target = $region21
  $region20: #{decoder_ae_forward.1} parent=0 // pred_region
    _
  $region21: #{decoder_ae_forward.1} parent=0 // pred_fallthru
    _

</llo_original>
